<compile_context>
chip_gen: v7x
topology: tpu7x:2x2x1
jax: 0.10.0
libtpu: 0.0.40
codegen_flags: <defaults>
</compile_context>

<pallas_src>
import jax
import jax.numpy as jnp
from jax.experimental import pallas as pl
from jax.experimental.pallas import tpu as pltpu

LN_EPS = 1e-5   # nn.LayerNorm default
LANE = 128      # TPU lane width
SUBLANE = 8     # TPU sublane width
MAX_TB = 256    # max batch-tile rows per grid step


def _round_up(n, m):
    return ((n + m - 1) // m) * m


def _pad_to(x, shape):
    pads = [(0, s - d) for d, s in zip(x.shape, shape)]
    if all(p == (0, 0) for p in pads):
        return x
    return jnp.pad(x, pads)


def make_fused_mainnet_kernel(input_size, hidden_sizes):
    """Kernel computing the entire MainNet forward for one batch tile.

    Refs: (x_ref (TB, K0), w_ref (L+1, R_PAD, D_PAD), v_ref (NV, D_PAD), o_ref (TB, D_PAD)).
    Row layout of v_ref: [b_0, gamma_0, beta_0, b_1, gamma_1, beta_1, ..., b_out, <zero pad>].
    """
    n_hidden = len(hidden_sizes)
    k0 = _round_up(input_size, SUBLANE)          # real (sublane-rounded) K of layer 0

    def kernel(x_ref, w_ref, v_ref, o_ref):
        d_pad = o_ref.shape[-1]
        x = x_ref[...]
        for li in range(n_hidden):
            k = k0 if li == 0 else d_pad          # static slice of the stacked weight
            w = w_ref[li, :k, :]
            b = v_ref[3 * li: 3 * li + 1, :]
            g = v_ref[3 * li + 1: 3 * li + 2, :]
            beta = v_ref[3 * li + 2: 3 * li + 3, :]
            d = hidden_sizes[li]                  # real feature count (static)

            # Linear + tanh.  Padded output lanes are tanh(0 + 0) == 0 exactly.
            h = jnp.tanh(jnp.dot(x, w, preferred_element_type=jnp.float32) + b)

            # LayerNorm (biased variance, like nn.LayerNorm) over the real d features.
            # Padded lanes of h are exactly 0, so unmasked sums are correct.
            s1 = jnp.sum(h, axis=-1, keepdims=True)
            s2 = jnp.sum(h * h, axis=-1, keepdims=True)
            mean = s1 * (1.0 / d)
            var = jnp.maximum(s2 * (1.0 / d) - mean * mean, 0.0)
            inv = jax.lax.rsqrt(var + LN_EPS)
            # gamma/beta are zero in padded lanes -> padded lanes of the activation stay 0.
            x = (h - mean) * inv * g + beta
            # Dropout: identity in eval mode.

        w_out = w_ref[n_hidden, :d_pad, :]
        b_out = v_ref[3 * n_hidden: 3 * n_hidden + 1, :]
        o_ref[...] = jnp.dot(x, w_out, preferred_element_type=jnp.float32) + b_out

    return kernel


def make_mainnet_forward(input_size, hidden_sizes):
    hidden_sizes = tuple(int(h) for h in hidden_sizes)
    kernel = make_fused_mainnet_kernel(input_size, hidden_sizes)
    k0 = _round_up(input_size, SUBLANE)

    @jax.jit
    def forward(M, w_stack, v_stack):
        B = M.shape[0]
        d_pad = w_stack.shape[-1]

        # Batch tiling: single full-extent tile for small B, else MAX_TB-row tiles on a
        # parallel grid (weights stay VMEM-resident; x/out tiles are pipelined).
        b8 = _round_up(B, SUBLANE)
        if b8 <= MAX_TB:
            tb, b_pad = b8, b8
        else:
            tb = MAX_TB
            b_pad = _round_up(b8, tb)
        nb = b_pad // tb

        M_pad = _pad_to(M.astype(jnp.float32), (b_pad, k0))

        y_pad = pl.pallas_call(
            kernel,
            out_shape=jax.ShapeDtypeStruct((b_pad, d_pad), jnp.float32),
            grid=(nb,),
            in_specs=[
                pl.BlockSpec((tb, k0), lambda i: (i, 0)),
                pl.BlockSpec(w_stack.shape, lambda i: (0, 0, 0)),   # resident across steps
                pl.BlockSpec(v_stack.shape, lambda i: (0, 0)),      # resident across steps
            ],
            out_specs=pl.BlockSpec((tb, d_pad), lambda i: (i, 0)),
            compiler_params=pltpu.CompilerParams(
                dimension_semantics=("parallel",)),
        )(M_pad, w_stack, v_stack)
        return y_pad[:B, :1]   # real output is column 0

    return forward


def init_params(key, input_size, hidden_sizes):
    """Deterministic synthetic init matching MainNet's parameter shapes (weights as (in, out))."""
    params = []
    dims = [input_size] + list(hidden_sizes)
    for i in range(len(hidden_sizes)):
        key, kw, kb = jax.random.split(key, 3)
        bound = 1.0 / (dims[i] ** 0.5)
        w = jax.random.uniform(kw, (dims[i], dims[i + 1]), jnp.float32, -bound, bound)
        b = jax.random.uniform(kb, (dims[i + 1],), jnp.float32, -bound, bound)
        gamma = jnp.ones((dims[i + 1],), jnp.float32)
        beta = jnp.zeros((dims[i + 1],), jnp.float32)
        params.append((w, b, gamma, beta))
    key, kw, kb = jax.random.split(key, 3)
    bound = 1.0 / (hidden_sizes[-1] ** 0.5)
    w_out = jax.random.uniform(kw, (hidden_sizes[-1], 1), jnp.float32, -bound, bound)
    b_out = jax.random.uniform(kb, (1,), jnp.float32, -bound, bound)
    return params, (w_out, b_out)


def pack_params(input_size, hidden_sizes, params, out_params):
    """Pack all parameters into one weight stack and one vector stack (zero lane-padded)."""
    n_hidden = len(hidden_sizes)
    d_pad = _round_up(max(list(hidden_sizes) + [1]), LANE)
    r_pad = max(_round_up(input_size, SUBLANE), d_pad)

    w_stack = jnp.zeros((n_hidden + 1, r_pad, d_pad), jnp.float32)
    nv = _round_up(3 * n_hidden + 1, SUBLANE)
    v_stack = jnp.zeros((nv, d_pad), jnp.float32)

    for li, (w, b, g, beta) in enumerate(params):
        di, do = w.shape
        w_stack = w_stack.at[li, :di, :do].set(w)
        v_stack = v_stack.at[3 * li, :do].set(b)
        v_stack = v_stack.at[3 * li + 1, :do].set(g)
        v_stack = v_stack.at[3 * li + 2, :do].set(beta)

    w_out, b_out = out_params
    w_stack = w_stack.at[n_hidden, :w_out.shape[0], :1].set(w_out)
    v_stack = v_stack.at[3 * n_hidden, :1].set(b_out)
    return w_stack, v_stack


if __name__ == "__main__":
    key = jax.random.PRNGKey(0)
    batch = 8
    input_size = 16
    hidden_sizes = [32, 32]

    kx, kp = jax.random.split(key)
    M = jax.random.normal(kx, (batch, input_size), jnp.float32)
    params, out_params = init_params(kp, input_size, hidden_sizes)
    w_stack, v_stack = pack_params(input_size, hidden_sizes, params, out_params)

    forward = make_mainnet_forward(input_size, hidden_sizes)
    Y = forward(M, w_stack, v_stack)
    jax.block_until_ready(Y)
    assert Y.shape == (batch, 1), Y.shape

    # Pure-JAX reference check of the fused kernel (unpadded math).
    def ref_forward(x):
        for (w, b, gamma, beta) in params:
            h = jnp.tanh(x @ w + b)
            mu = jnp.mean(h, axis=-1, keepdims=True)
            var = jnp.mean((h - mu) ** 2, axis=-1, keepdims=True)
            x = (h - mu) / jnp.sqrt(var + LN_EPS) * gamma + beta
        w_out, b_out = out_params
        return x @ w_out + b_out

    Y_ref = ref_forward(M)
    assert jnp.allclose(Y, Y_ref, atol=5e-5, rtol=5e-5), (Y, Y_ref)

    print("KERNEL_OK")
</pallas_src>

<mosaic_0001>
module attributes {stable_mosaic.version = 11 : i64} {
  func.func @kernel(%arg0: i32, %arg1: memref<8x16xf32, #tpu.memory_space<vmem>>, %arg2: memref<3x128x128xf32, #tpu.memory_space<vmem>>, %arg3: memref<8x128xf32, #tpu.memory_space<vmem>>, %arg4: memref<8x128xf32, #tpu.memory_space<vmem>>) attributes {dimension_semantics = [#tpu.dimension_semantics<parallel>], iteration_bounds = array<i64: 1>, scalar_prefetch = 0 : i64, scratch_operands = 0 : i64, tpu.core_type = #tpu.core_type<tc>, window_params = [{transform_indices = @transform_0, window_bounds = array<i64: 8, 16>}, {pipeline_mode = #tpu.pipeline_mode<synchronous>, transform_indices = @transform_1, window_bounds = array<i64: 3, 128, 128>}, {pipeline_mode = #tpu.pipeline_mode<synchronous>, transform_indices = @transform_2, window_bounds = array<i64: 8, 128>}, {transform_indices = @transform_3, window_bounds = array<i64: 8, 128>}]} {
    %c0 = arith.constant 0 : index
    %c0_0 = arith.constant 0 : index
    %0 = vector.load %arg1[%c0, %c0_0] : memref<8x16xf32, #tpu.memory_space<vmem>>, vector<8x16xf32>
    %c0_1 = arith.constant 0 : index
    %c0_2 = arith.constant 0 : index
    %c0_3 = arith.constant 0 : index
    %1 = vector.load %arg2[%c0_1, %c0_2, %c0_3] : memref<3x128x128xf32, #tpu.memory_space<vmem>>, vector<1x16x128xf32>
    %2 = vector.shape_cast %1 : vector<1x16x128xf32> to vector<16x128xf32>
    %c0_4 = arith.constant 0 : index
    %c0_5 = arith.constant 0 : index
    %3 = vector.load %arg3[%c0_4, %c0_5] : memref<8x128xf32, #tpu.memory_space<vmem>>, vector<1x128xf32>
    %c1 = arith.constant 1 : index
    %c0_6 = arith.constant 0 : index
    %4 = vector.load %arg3[%c1, %c0_6] : memref<8x128xf32, #tpu.memory_space<vmem>>, vector<1x128xf32>
    %c2 = arith.constant 2 : index
    %c0_7 = arith.constant 0 : index
    %5 = vector.load %arg3[%c2, %c0_7] : memref<8x128xf32, #tpu.memory_space<vmem>>, vector<1x128xf32>
    %cst = arith.constant dense<0.000000e+00> : vector<8x128xf32>
    %6 = tpu.matmul %0, %2, %cst {dimension_numbers = #tpu.dot_dimension_numbers<[1], [0], [0], [1], [0, 0, 1, 1], [], []>} : vector<8x16xf32>, vector<16x128xf32>, vector<8x128xf32> -> vector<8x128xf32>
    %7 = vector.broadcast %3 : vector<1x128xf32> to vector<8x128xf32>
    %8 = arith.addf %6, %7 : vector<8x128xf32>
    %9 = math.tanh %8 : vector<8x128xf32>
    %cst_8 = arith.constant dense<0.000000e+00> : vector<8xf32>
    %10 = vector.multi_reduction <add>, %9, %cst_8 [1] : vector<8x128xf32> to vector<8xf32>
    %11 = vector.shape_cast %10 : vector<8xf32> to vector<8x1xf32>
    %12 = arith.mulf %9, %9 : vector<8x128xf32>
    %cst_9 = arith.constant dense<0.000000e+00> : vector<8xf32>
    %13 = vector.multi_reduction <add>, %12, %cst_9 [1] : vector<8x128xf32> to vector<8xf32>
    %14 = vector.shape_cast %13 : vector<8xf32> to vector<8x1xf32>
    %cst_10 = arith.constant 3.125000e-02 : f32
    %15 = vector.broadcast %cst_10 : f32 to vector<8x1xf32>
    %16 = arith.mulf %11, %15 : vector<8x1xf32>
    %cst_11 = arith.constant 3.125000e-02 : f32
    %17 = vector.broadcast %cst_11 : f32 to vector<8x1xf32>
    %18 = arith.mulf %14, %17 : vector<8x1xf32>
    %19 = arith.mulf %16, %16 : vector<8x1xf32>
    %20 = arith.subf %18, %19 : vector<8x1xf32>
    %cst_12 = arith.constant 0.000000e+00 : f32
    %21 = vector.broadcast %cst_12 : f32 to vector<8x1xf32>
    %22 = arith.maximumf %20, %21 : vector<8x1xf32>
    %cst_13 = arith.constant 9.99999974E-6 : f32
    %23 = vector.broadcast %cst_13 : f32 to vector<8x1xf32>
    %24 = arith.addf %22, %23 : vector<8x1xf32>
    %25 = math.rsqrt %24 : vector<8x1xf32>
    %26 = vector.broadcast %16 : vector<8x1xf32> to vector<8x128xf32>
    %27 = arith.subf %9, %26 : vector<8x128xf32>
    %28 = vector.broadcast %25 : vector<8x1xf32> to vector<8x128xf32>
    %29 = arith.mulf %27, %28 : vector<8x128xf32>
    %30 = vector.broadcast %4 : vector<1x128xf32> to vector<8x128xf32>
    %31 = arith.mulf %29, %30 : vector<8x128xf32>
    %32 = vector.broadcast %5 : vector<1x128xf32> to vector<8x128xf32>
    %33 = arith.addf %31, %32 : vector<8x128xf32>
    %c1_14 = arith.constant 1 : index
    %c0_15 = arith.constant 0 : index
    %c0_16 = arith.constant 0 : index
    %34 = vector.load %arg2[%c1_14, %c0_15, %c0_16] : memref<3x128x128xf32, #tpu.memory_space<vmem>>, vector<1x128x128xf32>
    %35 = vector.shape_cast %34 : vector<1x128x128xf32> to vector<128x128xf32>
    %c3 = arith.constant 3 : index
    %c0_17 = arith.constant 0 : index
    %36 = vector.load %arg3[%c3, %c0_17] : memref<8x128xf32, #tpu.memory_space<vmem>>, vector<1x128xf32>
    %c4 = arith.constant 4 : index
    %c0_18 = arith.constant 0 : index
    %37 = vector.load %arg3[%c4, %c0_18] : memref<8x128xf32, #tpu.memory_space<vmem>>, vector<1x128xf32>
    %c5 = arith.constant 5 : index
    %c0_19 = arith.constant 0 : index
    %38 = vector.load %arg3[%c5, %c0_19] : memref<8x128xf32, #tpu.memory_space<vmem>>, vector<1x128xf32>
    %cst_20 = arith.constant dense<0.000000e+00> : vector<8x128xf32>
    %39 = tpu.matmul %33, %35, %cst_20 {dimension_numbers = #tpu.dot_dimension_numbers<[1], [0], [0], [1], [0, 0, 1, 1], [], []>} : vector<8x128xf32>, vector<128x128xf32>, vector<8x128xf32> -> vector<8x128xf32>
    %40 = vector.broadcast %36 : vector<1x128xf32> to vector<8x128xf32>
    %41 = arith.addf %39, %40 : vector<8x128xf32>
    %42 = math.tanh %41 : vector<8x128xf32>
    %cst_21 = arith.constant dense<0.000000e+00> : vector<8xf32>
    %43 = vector.multi_reduction <add>, %42, %cst_21 [1] : vector<8x128xf32> to vector<8xf32>
    %44 = vector.shape_cast %43 : vector<8xf32> to vector<8x1xf32>
    %45 = arith.mulf %42, %42 : vector<8x128xf32>
    %cst_22 = arith.constant dense<0.000000e+00> : vector<8xf32>
    %46 = vector.multi_reduction <add>, %45, %cst_22 [1] : vector<8x128xf32> to vector<8xf32>
    %47 = vector.shape_cast %46 : vector<8xf32> to vector<8x1xf32>
    %cst_23 = arith.constant 3.125000e-02 : f32
    %48 = vector.broadcast %cst_23 : f32 to vector<8x1xf32>
    %49 = arith.mulf %44, %48 : vector<8x1xf32>
    %cst_24 = arith.constant 3.125000e-02 : f32
    %50 = vector.broadcast %cst_24 : f32 to vector<8x1xf32>
    %51 = arith.mulf %47, %50 : vector<8x1xf32>
    %52 = arith.mulf %49, %49 : vector<8x1xf32>
    %53 = arith.subf %51, %52 : vector<8x1xf32>
    %cst_25 = arith.constant 0.000000e+00 : f32
    %54 = vector.broadcast %cst_25 : f32 to vector<8x1xf32>
    %55 = arith.maximumf %53, %54 : vector<8x1xf32>
    %cst_26 = arith.constant 9.99999974E-6 : f32
    %56 = vector.broadcast %cst_26 : f32 to vector<8x1xf32>
    %57 = arith.addf %55, %56 : vector<8x1xf32>
    %58 = math.rsqrt %57 : vector<8x1xf32>
    %59 = vector.broadcast %49 : vector<8x1xf32> to vector<8x128xf32>
    %60 = arith.subf %42, %59 : vector<8x128xf32>
    %61 = vector.broadcast %58 : vector<8x1xf32> to vector<8x128xf32>
    %62 = arith.mulf %60, %61 : vector<8x128xf32>
    %63 = vector.broadcast %37 : vector<1x128xf32> to vector<8x128xf32>
    %64 = arith.mulf %62, %63 : vector<8x128xf32>
    %65 = vector.broadcast %38 : vector<1x128xf32> to vector<8x128xf32>
    %66 = arith.addf %64, %65 : vector<8x128xf32>
    %c2_27 = arith.constant 2 : index
    %c0_28 = arith.constant 0 : index
    %c0_29 = arith.constant 0 : index
    %67 = vector.load %arg2[%c2_27, %c0_28, %c0_29] : memref<3x128x128xf32, #tpu.memory_space<vmem>>, vector<1x128x128xf32>
    %68 = vector.shape_cast %67 : vector<1x128x128xf32> to vector<128x128xf32>
    %c6 = arith.constant 6 : index
    %c0_30 = arith.constant 0 : index
    %69 = vector.load %arg3[%c6, %c0_30] : memref<8x128xf32, #tpu.memory_space<vmem>>, vector<1x128xf32>
    %cst_31 = arith.constant dense<0.000000e+00> : vector<8x128xf32>
    %70 = tpu.matmul %66, %68, %cst_31 {dimension_numbers = #tpu.dot_dimension_numbers<[1], [0], [0], [1], [0, 0, 1, 1], [], []>} : vector<8x128xf32>, vector<128x128xf32>, vector<8x128xf32> -> vector<8x128xf32>
    %71 = vector.broadcast %69 : vector<1x128xf32> to vector<8x128xf32>
    %72 = arith.addf %70, %71 : vector<8x128xf32>
    %c0_32 = arith.constant 0 : index
    %c0_33 = arith.constant 0 : index
    %73 = vector.load %arg4[%c0_32, %c0_33] : memref<8x128xf32, #tpu.memory_space<vmem>>, vector<8x128xf32>
    tpu.vector_store %arg4[%c0_32, %c0_33], %72 {strides = array<i32>} : memref<8x128xf32, #tpu.memory_space<vmem>>, vector<8x128xf32>,
    return
  }
  func.func @transform_0(%arg0: i32) -> (i32, i32) {
    %c0_i32 = arith.constant 0 : i32
    %c0_i32_0 = arith.constant 0 : i32
    return %arg0, %c0_i32 : i32, i32
  }
  func.func @transform_1(%arg0: i32) -> (i32, i32, i32) {
    %c0_i32 = arith.constant 0 : i32
    %c0_i32_0 = arith.constant 0 : i32
    %c0_i32_1 = arith.constant 0 : i32
    %c0_i32_2 = arith.constant 0 : i32
    return %c0_i32, %c0_i32_0, %c0_i32_1 : i32, i32, i32
  }
  func.func @transform_2(%arg0: i32) -> (i32, i32) {
    %c0_i32 = arith.constant 0 : i32
    %c0_i32_0 = arith.constant 0 : i32
    %c0_i32_1 = arith.constant 0 : i32
    return %c0_i32, %c0_i32_0 : i32, i32
  }
  func.func @transform_3(%arg0: i32) -> (i32, i32) {
    %c0_i32 = arith.constant 0 : i32
    %c0_i32_0 = arith.constant 0 : i32
    return %arg0, %c0_i32 : i32, i32
  }
}

</mosaic_0001>

<llo_original>
// kernel: forward.1
$region0: #{forward.1}
  #allocation0 [shape = 'u32[]', space=smem, size = 0x4, offset = 0x4, fixed_abs, tag = 'smem constant byte address 0x4 - core index']
  #allocation1 [shape = 'u32[144,128]{1,0:T(1,128)}', space=vmem, size = 0x12000, scoped, tag = 'internal scratch']
  %s0 = inlined_call_operand.hbm [shape: f32[8,16], index: 0, kind: input, shape index: {}]
  %s1 = inlined_call_operand.hbm [shape: f32[3,128,128], index: 1, kind: input, shape index: {}]
  %s2 = inlined_call_operand.hbm [shape: f32[8,128], index: 2, kind: input, shape index: {}]
  %s3 = inlined_call_operand.vmem [shape: f32[8,128], index: 3, kind: output, shape index: {}]
  %s4 = sld [smem:[#allocation0]]
  $region34: #{forward.1} parent=0
    _
  %s6 = ssub.s32 1, %s4
  %s7 = scalar_select 0, %s6, %s4
  $region1: #{forward.1} parent=0
    #allocation2 [shape = 'u8[4096]{0}', space=vmem, size = 0x1000, scoped, tag = 'input window, operand 0, single buffered']
    #allocation3 [shape = 's32[1]{0}', space=sflag, size = 0x4, scoped, tag = 'scoped memory for forward.1']
    #allocation4 [shape = 'u8[196608]{0}', space=vmem, size = 0x30000, scoped, tag = 'input window, operand 1, single buffered']
    #allocation5 [shape = 's32[1]{0}', space=sflag, size = 0x4, scoped, tag = 'scoped memory for forward.1']
    #allocation6 [shape = 'u8[4096]{0}', space=vmem, size = 0x1000, scoped, tag = 'input window, operand 2, single buffered']
    %8 = vsyncpa [#allocation3], 0
    %9 = vsyncpa [#allocation5], 0
    // Predicated region
    $region2: #{forward.1} parent=1 // pred_check
      _
    $region3: #{forward.1} parent=1 // pred_check_branch
      %11 = sbr.rel (0) target = $region5
    $region4: #{forward.1} parent=1 // pred_region
      %s13 = ssub.s32 128, 128
      %14 = vsyncadd [#allocation3], %s13
      %s16 = sshll.u32 [#allocation2], 4
      %s17 = int_to_ptr.vmem [resolvable:$true] %s16
      %19 = dma.hbm_to_vmem [thread:$0]  %s0, 128, %s17, [#allocation3]
    $region5: #{forward.1} parent=1 // pred_fallthru
      _
    // Predicated region
    $region6: #{forward.1} parent=1 // pred_check
      _
    $region7: #{forward.1} parent=1 // pred_check_branch
      %21 = sbr.rel (0) target = $region9
    $region8: #{forward.1} parent=1 // pred_region
      %s23 = ssub.s32 6144, 6144
      %24 = vsyncadd [#allocation5], %s23
      %s25 = sshll.u32 [#allocation4], 4
      %s26 = int_to_ptr.vmem [resolvable:$true] %s25
      %31 = dma.hbm_to_vmem [thread:$0]  %s1, 6144, %s26, [#allocation5], 128, 128, 8
    $region9: #{forward.1} parent=1 // pred_fallthru
      _
    // Predicated region
    $region10: #{forward.1} parent=1 // pred_check
      _
    $region11: #{forward.1} parent=1 // pred_check_branch
      %33 = sbr.rel (0) target = $region13
    $region12: #{forward.1} parent=1 // pred_region
      %s35 = ssub.s32 128, 128
      %36 = vsyncadd [#allocation5], %s35
      %s38 = sshll.u32 [#allocation6], 4
      %s39 = int_to_ptr.vmem [resolvable:$true] %s38
      %41 = dma.hbm_to_vmem [thread:$0]  %s2, 128, %s39, [#allocation5]
    $region13: #{forward.1} parent=1 // pred_fallthru
      _
    // Predicated region
    $region14: #{forward.1} parent=1 // pred_check
      _
    $region15: #{forward.1} parent=1 // pred_check_branch
      %43 = sbr.rel (0) target = $region17
    $region16: #{forward.1} parent=1 // pred_region
      %44 = dma.done [#allocation3], 128
    $region17: #{forward.1} parent=1 // pred_fallthru
      _
    // Predicated region
    $region18: #{forward.1} parent=1 // pred_check
      _
    $region19: #{forward.1} parent=1 // pred_check_branch
      %46 = sbr.rel (0) target = $region21
    $region20: #{forward.1} parent=1 // pred_region
      %47 = dma.done [#allocation5], 6144
    $region21: #{forward.1} parent=1 // pred_fallthru
      _
    // Predicated region
    $region22: #{forward.1} parent=1 // pred_check
      _
    $region23: #{forward.1} parent=1 // pred_check_branch
      %49 = sbr.rel (0) target = $region25
    $region24: #{forward.1} parent=1 // pred_region
      %50 = dma.done [#allocation5], 128
    $region25: #{forward.1} parent=1 // pred_fallthru
      _
    %v51 = vld [vmem:[#allocation2] sm:$0xff]
    %v52 = vld [vmem:[#allocation4] sm:$0xff]
    %v53 = vld [vmem:[#allocation4 + $0x8] sm:$0xff]
    %v54 = vld [vmem:[#allocation6] sm:$0x1]
    %v55 = vld [vmem:[#allocation6 + $0x1] sm:$0x1]
    %v56 = vld [vmem:[#allocation6 + $0x2] sm:$0x1]
    %v57 = vlaneseq
    %v58 = vshrl.u32 %v57, 7
    %v59 = vsub.s32 0, %v58
    %v60 = vrot.slane %v54, %v59
    %vm61 = vcmask 130048
    %v63 = vsel %vm61, %v51, 0
    %65 = vmatprep.subr.mxu0 0.0
    %66 = vmatpush1.msra.mxu0 %v52
    %67 = vmatprep.subr.mxu0 0.0
    %68 = vmatpush1.msra.mxu0 %v53
    %69 = vmatprep.subr.mxu0 0.0
    %70 = vmatpush1.msra.mxu0 0.0
    %71 = vmatprep.subr.mxu0 0.0
    %72 = vmatpush1.msra.mxu0 0.0
    %73 = vmatprep.subr.mxu0 0.0
    %74 = vmatpush1.msra.mxu0 0.0
    %75 = vmatprep.subr.mxu0 0.0
    %76 = vmatpush1.msra.mxu0 0.0
    %77 = vmatprep.subr.mxu0 0.0
    %78 = vmatpush1.msra.mxu0 0.0
    %79 = vmatprep.subr.mxu0 0.0
    %80 = vmatpush1.msra.mxu0 0.0
    %81 = vmatprep.subr.mxu0 0.0
    %82 = vmatpush1.msra.mxu0 0.0
    %83 = vmatprep.subr.mxu0 0.0
    %84 = vmatpush1.msra.mxu0 0.0
    %85 = vmatprep.subr.mxu0 0.0
    %86 = vmatpush1.msra.mxu0 0.0
    %87 = vmatprep.subr.mxu0 0.0
    %88 = vmatpush1.msra.mxu0 0.0
    %89 = vmatprep.subr.mxu0 0.0
    %90 = vmatpush1.msra.mxu0 0.0
    %91 = vmatprep.subr.mxu0 0.0
    %92 = vmatpush1.msra.mxu0 0.0
    %93 = vmatprep.subr.mxu0 0.0
    %94 = vmatpush1.msra.mxu0 0.0
    %95 = vmatprep.subr.mxu0 0.0
    %96 = vmatpush1.msra.mxu0 0.0
    %97 = vmatprep.subr.mxu0 0.0
    %98 = vmatpush1.msra.mxu0 0.0
    %99 = vmatprep.subr.mxu0 0.0
    %100 = vmatpush1.msra.mxu0 0.0
    %101 = vmatprep.subr.mxu0 0.0
    %102 = vmatpush1.msra.mxu0 0.0
    %103 = vmatprep.subr.mxu0 0.0
    %104 = vmatpush1.msra.mxu0 0.0
    %105 = vmatprep.subr.mxu0 0.0
    %106 = vmatpush1.msra.mxu0 0.0
    %107 = vmatprep.subr.mxu0 0.0
    %108 = vmatpush1.msra.mxu0 0.0
    %109 = vmatprep.subr.mxu0 0.0
    %110 = vmatpush1.msra.mxu0 0.0
    %111 = vmatprep.subr.mxu0 0.0
    %112 = vmatpush1.msra.mxu0 0.0
    %113 = vmatprep.subr.mxu0 0.0
    %114 = vmatpush1.msra.mxu0 0.0
    %115 = vmatprep.subr.mxu0 0.0
    %116 = vmatpush1.msra.mxu0 0.0
    %117 = vmatprep.subr.mxu0 0.0
    %118 = vmatpush1.msra.mxu0 0.0
    %119 = vmatprep.subr.mxu0 0.0
    %120 = vmatpush1.msra.mxu0 0.0
    %121 = vmatprep.subr.mxu0 0.0
    %122 = vmatpush1.msra.mxu0 0.0
    %123 = vmatprep.subr.mxu0 0.0
    %124 = vmatpush1.msra.mxu0 0.0
    %125 = vmatprep.subr.mxu0 0.0
    %126 = vmatpush1.msra.mxu0 0.0
    %127 = vmatprep.subr.mxu0 0.0
    %128 = vmatpush1.msra.mxu0 0.0
    %129 = vmatprep.mubr.f32.mxu0 0.0
    %130 = vmatmul.mubr.f32.gmra.mrb[0].mxu0 %v63
    %v131 = vpop.f32.mrb[0].mxu0
    %v132 = vadd.f32 %v60, %v131
    %v133 = vpop.f32.mrb[0].mxu0
    %134 = vdwg.mxu0
    %v135 = vtanh.pop %v132
    %136 = vadd.xlane.f32.xlu0 %v135
    %v137 = vpop.xlane.xlu0 %136
    %v138 = vmul.f32 %v135, %v135
    %139 = vadd.xlane.f32.xlu0 %v138
    %v140 = vpop.xlane.xlu0 %139
    %v141 = vmul.f32 %v137, 0.03125
    %v142 = vmul.f32 %v140, 0.03125
    %v143 = vmul.f32 %v141, %v141
    %v144 = vsub.f32 %v142, %v143
    %v145 = vmax.f32 %v144, 0.0
    %v146 = vadd.f32 %v145, 1e-05
    %v147 = vrsqrt.pop %v146
    %v148 = vsub.f32 %v135, %v141
    %v149 = vmul.f32 %v148, %v147
    %v150 = vlaneseq
    %v151 = vshrl.u32 %v150, 7
    %v152 = vsub.s32 0, %v151
    %v153 = vrot.slane %v55, %v152
    %v154 = vmul.f32 %v149, %v153
    %v155 = vlaneseq
    %v156 = vshrl.u32 %v155, 7
    %v157 = vsub.s32 0, %v156
    %v158 = vrot.slane %v56, %v157
    %v159 = vadd.f32 %v154, %v158
    %s160 = scalar_lea.vmem [#allocation4], 128
    %v161 = vld [vmem:[%s160] sm:$0xff]
    %v162 = vld [vmem:[%s160 + $0x8] sm:$0xff]
    %v163 = vld [vmem:[%s160 + $0x10] sm:$0xff]
    %v164 = vld [vmem:[%s160 + $0x18] sm:$0xff]
    %v165 = vld [vmem:[%s160 + $0x20] sm:$0xff]
    %v166 = vld [vmem:[%s160 + $0x28] sm:$0xff]
    %v167 = vld [vmem:[%s160 + $0x30] sm:$0xff]
    %v168 = vld [vmem:[%s160 + $0x38] sm:$0xff]
    %v169 = vld [vmem:[%s160 + $0x40] sm:$0xff]
    %v170 = vld [vmem:[%s160 + $0x48] sm:$0xff]
    %v171 = vld [vmem:[%s160 + $0x50] sm:$0xff]
    %v172 = vld [vmem:[%s160 + $0x58] sm:$0xff]
    %v173 = vld [vmem:[%s160 + $0x60] sm:$0xff]
    %v174 = vld [vmem:[%s160 + $0x68] sm:$0xff]
    %v175 = vld [vmem:[%s160 + $0x70] sm:$0xff]
    %v176 = vld [vmem:[%s160 + $0x78] sm:$0xff]
    %v177 = vld [vmem:[#allocation6 + $0x3] sm:$0x1]
    %v178 = vld [vmem:[#allocation6 + $0x4] sm:$0x1]
    %v179 = vld [vmem:[#allocation6 + $0x5] sm:$0x1]
    %v180 = vlaneseq
    %v181 = vshrl.u32 %v180, 7
    %v182 = vsub.s32 0, %v181
    %v183 = vrot.slane %v177, %v182
    %184 = vmatprep.subr.mxu0 0.0
    %185 = vmatpush1.msra.mxu0 %v161
    %186 = vmatprep.subr.mxu0 0.0
    %187 = vmatpush1.msra.mxu0 %v162
    %188 = vmatprep.subr.mxu0 0.0
    %189 = vmatpush1.msra.mxu0 %v163
    %190 = vmatprep.subr.mxu0 0.0
    %191 = vmatpush1.msra.mxu0 %v164
    %192 = vmatprep.subr.mxu0 0.0
    %193 = vmatpush1.msra.mxu0 %v165
    %194 = vmatprep.subr.mxu0 0.0
    %195 = vmatpush1.msra.mxu0 %v166
    %196 = vmatprep.subr.mxu0 0.0
    %197 = vmatpush1.msra.mxu0 %v167
    %198 = vmatprep.subr.mxu0 0.0
    %199 = vmatpush1.msra.mxu0 %v168
    %200 = vmatprep.subr.mxu0 0.0
    %201 = vmatpush1.msra.mxu0 %v169
    %202 = vmatprep.subr.mxu0 0.0
    %203 = vmatpush1.msra.mxu0 %v170
    %204 = vmatprep.subr.mxu0 0.0
    %205 = vmatpush1.msra.mxu0 %v171
    %206 = vmatprep.subr.mxu0 0.0
    %207 = vmatpush1.msra.mxu0 %v172
    %208 = vmatprep.subr.mxu0 0.0
    %209 = vmatpush1.msra.mxu0 %v173
    %210 = vmatprep.subr.mxu0 0.0
    %211 = vmatpush1.msra.mxu0 %v174
    %212 = vmatprep.subr.mxu0 0.0
    %213 = vmatpush1.msra.mxu0 %v175
    %214 = vmatprep.subr.mxu0 0.0
    %215 = vmatpush1.msra.mxu0 %v176
    %216 = vmatprep.subr.mxu0 0.0
    %217 = vmatpush1.msra.mxu0 0.0
    %218 = vmatprep.subr.mxu0 0.0
    %219 = vmatpush1.msra.mxu0 0.0
    %220 = vmatprep.subr.mxu0 0.0
    %221 = vmatpush1.msra.mxu0 0.0
    %222 = vmatprep.subr.mxu0 0.0
    %223 = vmatpush1.msra.mxu0 0.0
    %224 = vmatprep.subr.mxu0 0.0
    %225 = vmatpush1.msra.mxu0 0.0
    %226 = vmatprep.subr.mxu0 0.0
    %227 = vmatpush1.msra.mxu0 0.0
    %228 = vmatprep.subr.mxu0 0.0
    %229 = vmatpush1.msra.mxu0 0.0
    %230 = vmatprep.subr.mxu0 0.0
    %231 = vmatpush1.msra.mxu0 0.0
    %232 = vmatprep.subr.mxu0 0.0
    %233 = vmatpush1.msra.mxu0 0.0
    %234 = vmatprep.subr.mxu0 0.0
    %235 = vmatpush1.msra.mxu0 0.0
    %236 = vmatprep.subr.mxu0 0.0
    %237 = vmatpush1.msra.mxu0 0.0
    %238 = vmatprep.subr.mxu0 0.0
    %239 = vmatpush1.msra.mxu0 0.0
    %240 = vmatprep.subr.mxu0 0.0
    %241 = vmatpush1.msra.mxu0 0.0
    %242 = vmatprep.subr.mxu0 0.0
    %243 = vmatpush1.msra.mxu0 0.0
    %244 = vmatprep.subr.mxu0 0.0
    %245 = vmatpush1.msra.mxu0 0.0
    %246 = vmatprep.subr.mxu0 0.0
    %247 = vmatpush1.msra.mxu0 0.0
    %248 = vmatprep.mubr.f32.mxu0 0.0
    %249 = vmatmul.mubr.f32.gmra.mrb[0].mxu0 %v159
    %v250 = vpop.f32.mrb[0].mxu0
    %v251 = vadd.f32 %v183, %v250
    %v252 = vpop.f32.mrb[0].mxu0
    %253 = vdwg.mxu0
    %v254 = vtanh.pop %v251
    %255 = vadd.xlane.f32.xlu0 %v254
    %v256 = vpop.xlane.xlu0 %255
    %v257 = vmul.f32 %v254, %v254
    %258 = vadd.xlane.f32.xlu0 %v257
    %v259 = vpop.xlane.xlu0 %258
    %v260 = vmul.f32 %v256, 0.03125
    %v261 = vmul.f32 %v259, 0.03125
    %v262 = vmul.f32 %v260, %v260
    %v263 = vsub.f32 %v261, %v262
    %v264 = vmax.f32 %v263, 0.0
    %v265 = vadd.f32 %v264, 1e-05
    %v266 = vrsqrt.pop %v265
    %v267 = vsub.f32 %v254, %v260
    %v268 = vmul.f32 %v267, %v266
    %v269 = vlaneseq
    %v270 = vshrl.u32 %v269, 7
    %v271 = vsub.s32 0, %v270
    %v272 = vrot.slane %v178, %v271
    %v273 = vmul.f32 %v268, %v272
    %v274 = vlaneseq
    %v275 = vshrl.u32 %v274, 7
    %v276 = vsub.s32 0, %v275
    %v277 = vrot.slane %v179, %v276
    %v278 = vadd.f32 %v273, %v277
    %s279 = scalar_lea.vmem [#allocation4], 256
    %v280 = vld [vmem:[%s279] sm:$0xff]
    %v281 = vld [vmem:[%s279 + $0x8] sm:$0xff]
    %v282 = vld [vmem:[%s279 + $0x10] sm:$0xff]
    %v283 = vld [vmem:[%s279 + $0x18] sm:$0xff]
    %v284 = vld [vmem:[%s279 + $0x20] sm:$0xff]
    %v285 = vld [vmem:[%s279 + $0x28] sm:$0xff]
    %v286 = vld [vmem:[%s279 + $0x30] sm:$0xff]
    %v287 = vld [vmem:[%s279 + $0x38] sm:$0xff]
    %v288 = vld [vmem:[%s279 + $0x40] sm:$0xff]
    %v289 = vld [vmem:[%s279 + $0x48] sm:$0xff]
    %v290 = vld [vmem:[%s279 + $0x50] sm:$0xff]
    %v291 = vld [vmem:[%s279 + $0x58] sm:$0xff]
    %v292 = vld [vmem:[%s279 + $0x60] sm:$0xff]
    %v293 = vld [vmem:[%s279 + $0x68] sm:$0xff]
    %v294 = vld [vmem:[%s279 + $0x70] sm:$0xff]
    %v295 = vld [vmem:[%s279 + $0x78] sm:$0xff]
    %v296 = vld [vmem:[#allocation6 + $0x6] sm:$0x1]
    %v297 = vlaneseq
    %v298 = vshrl.u32 %v297, 7
    %v299 = vsub.s32 0, %v298
    %v300 = vrot.slane %v296, %v299
    %301 = vmatprep.subr.mxu0 0.0
    %302 = vmatpush1.msra.mxu0 %v280
    %303 = vmatprep.subr.mxu0 0.0
    %304 = vmatpush1.msra.mxu0 %v281
    %305 = vmatprep.subr.mxu0 0.0
    %306 = vmatpush1.msra.mxu0 %v282
    %307 = vmatprep.subr.mxu0 0.0
    %308 = vmatpush1.msra.mxu0 %v283
    %309 = vmatprep.subr.mxu0 0.0
    %310 = vmatpush1.msra.mxu0 %v284
    %311 = vmatprep.subr.mxu0 0.0
    %312 = vmatpush1.msra.mxu0 %v285
    %313 = vmatprep.subr.mxu0 0.0
    %314 = vmatpush1.msra.mxu0 %v286
    %315 = vmatprep.subr.mxu0 0.0
    %316 = vmatpush1.msra.mxu0 %v287
    %317 = vmatprep.subr.mxu0 0.0
    %318 = vmatpush1.msra.mxu0 %v288
    %319 = vmatprep.subr.mxu0 0.0
    %320 = vmatpush1.msra.mxu0 %v289
    %321 = vmatprep.subr.mxu0 0.0
    %322 = vmatpush1.msra.mxu0 %v290
    %323 = vmatprep.subr.mxu0 0.0
    %324 = vmatpush1.msra.mxu0 %v291
    %325 = vmatprep.subr.mxu0 0.0
    %326 = vmatpush1.msra.mxu0 %v292
    %327 = vmatprep.subr.mxu0 0.0
    %328 = vmatpush1.msra.mxu0 %v293
    %329 = vmatprep.subr.mxu0 0.0
    %330 = vmatpush1.msra.mxu0 %v294
    %331 = vmatprep.subr.mxu0 0.0
    %332 = vmatpush1.msra.mxu0 %v295
    %333 = vmatprep.subr.mxu0 0.0
    %334 = vmatpush1.msra.mxu0 0.0
    %335 = vmatprep.subr.mxu0 0.0
    %336 = vmatpush1.msra.mxu0 0.0
    %337 = vmatprep.subr.mxu0 0.0
    %338 = vmatpush1.msra.mxu0 0.0
    %339 = vmatprep.subr.mxu0 0.0
    %340 = vmatpush1.msra.mxu0 0.0
    %341 = vmatprep.subr.mxu0 0.0
    %342 = vmatpush1.msra.mxu0 0.0
    %343 = vmatprep.subr.mxu0 0.0
    %344 = vmatpush1.msra.mxu0 0.0
    %345 = vmatprep.subr.mxu0 0.0
    %346 = vmatpush1.msra.mxu0 0.0
    %347 = vmatprep.subr.mxu0 0.0
    %348 = vmatpush1.msra.mxu0 0.0
    %349 = vmatprep.subr.mxu0 0.0
    %350 = vmatpush1.msra.mxu0 0.0
    %351 = vmatprep.subr.mxu0 0.0
    %352 = vmatpush1.msra.mxu0 0.0
    %353 = vmatprep.subr.mxu0 0.0
    %354 = vmatpush1.msra.mxu0 0.0
    %355 = vmatprep.subr.mxu0 0.0
    %356 = vmatpush1.msra.mxu0 0.0
    %357 = vmatprep.subr.mxu0 0.0
    %358 = vmatpush1.msra.mxu0 0.0
    %359 = vmatprep.subr.mxu0 0.0
    %360 = vmatpush1.msra.mxu0 0.0
    %361 = vmatprep.subr.mxu0 0.0
    %362 = vmatpush1.msra.mxu0 0.0
    %363 = vmatprep.subr.mxu0 0.0
    %364 = vmatpush1.msra.mxu0 0.0
    %365 = vmatprep.mubr.f32.mxu0 0.0
    %366 = vmatmul.mubr.f32.gmra.mrb[0].mxu0 %v278
    %v367 = vpop.f32.mrb[0].mxu0
    %v368 = vadd.f32 %v300, %v367
    %v369 = vpop.f32.mrb[0].mxu0
    %370 = vdwg.mxu0
    %371 = vst [vmem:[%s3] sm:$0xff] %v368
    // Predicated region
    $region26: #{forward.1} parent=1 // pred_check
      _
    $region27: #{forward.1} parent=1 // pred_check_branch
      %373 = sbr.rel (0) target = $region29
    $region28: #{forward.1} parent=1 // pred_region
      _
    $region29: #{forward.1} parent=1 // pred_fallthru
      _
    // Predicated region
    $region30: #{forward.1} parent=1 // pred_check
      _
    $region31: #{forward.1} parent=1 // pred_check_branch
      %375 = sbr.rel (0) target = $region33
    $region32: #{forward.1} parent=1 // pred_region
      _
    $region33: #{forward.1} parent=1 // pred_fallthru
      _
    %376 = vsyncpa [#allocation3], 1
    %377 = vsyncpa [#allocation5], 1

</llo_original>
